<compile_context>
chip_gen: v5e
topology: v5e:2x2
jax: 0.10.0
libtpu: 0.0.40
codegen_flags: <defaults>
</compile_context>

<pallas_src>
import jax
import jax.numpy as jnp
import numpy as np
from jax import lax
from jax.experimental import pallas as pl
from jax.experimental.pallas import tpu as pltpu


def _round_up(x, m):
    return (x + m - 1) // m * m


def _bag_sum_kernel(reps_ref, start_ref, end_ref, partial_ref):
    c = pl.program_id(0)          # parallel split (megacore axis on v7x)
    t = pl.program_id(1)          # N-tile within this split (reduction axis)
    tile_n = reps_ref.shape[0]
    B = start_ref.shape[0]

    @pl.when(t == 0)
    def _():
        partial_ref[...] = jnp.zeros_like(partial_ref)

    # 0/1 selector: sel[i, n] = 1.0 iff start[i] <= global_n < end[i].
    # (1/count is applied once in the finalize kernel, not per tile.)
    base = (c * pl.num_programs(1) + t) * tile_n
    col = base + lax.broadcasted_iota(jnp.int32, (B, tile_n), 1)
    sel = ((col >= start_ref[...]) & (col < end_ref[...])).astype(jnp.float32)

    # Bag partial sums: one MXU op per tile, contracting over tile_n.
    partial_ref[...] += jnp.dot(
        sel, reps_ref[...], preferred_element_type=jnp.float32
    )[None, :, :]


def _finalize_kernel(partial_ref, invcnt_ref, w_ref, b_ref, out_ref):
    # Combine per-split partials (tiny: num_splits x B x D) and run the head.
    bag_sum = jnp.sum(partial_ref[...], axis=0)                 # (B, D)
    bag_mean = bag_sum * invcnt_ref[...]                        # (B, D) * (B, 1)
    # TODO(synk): nn.Dropout is stochastic and training-only; identity here (eval mode).
    logits = lax.dot_general(
        bag_mean, w_ref[...],
        dimension_numbers=(((1,), (1,)), ((), ())),             # contract D; W stays (C, D)
        preferred_element_type=jnp.float32,
    ) + b_ref[...]
    m = jnp.max(logits, axis=-1, keepdims=True)
    e = jnp.exp(logits - m)
    # Softmax runs exactly once on a (B, C) tile (hoisted out of the hot loop),
    # so the exact reciprocal is free; approx=True buys nothing here.
    inv = pl.reciprocal(jnp.sum(e, axis=-1, keepdims=True))
    out_ref[...] = (e * inv).astype(out_ref.dtype)


def avg_forward(reps, scope, weight, bias, class_num, *, tile_n=8192, num_splits=2):
    """reps: (N, D) f32; scope: (B+1,) i32; weight: (C, D) PyTorch Linear layout; bias: (C,)."""
    # TODO(synk): if the upstream encoder emits bf16, stream reps as bf16 (f32 accumulate stays).
    reps = jnp.asarray(reps, jnp.float32)
    N, D = reps.shape
    B = int(scope.shape[0]) - 1
    C = int(class_num)

    scope = jnp.asarray(scope, jnp.int32)
    starts = scope[:-1].reshape(B, 1)
    ends = scope[1:].reshape(B, 1)
    # NOTE: empty bags (start == end) yield a zero bag-rep (softmax of bias) instead
    # of the NaN a PyTorch mean over an empty slice would produce.
    inv_cnt = 1.0 / jnp.maximum(ends - starts, 1).astype(jnp.float32)

    w = jnp.asarray(weight, jnp.float32)               # (C, D), contracted on D in-kernel
    b2 = jnp.asarray(bias, jnp.float32).reshape(1, C)  # (1, C)

    # --- Tile sizing --------------------------------------------------------
    # Mosaic lane-pads the (tile_n, D) f32 block to 128 lanes, so budget with
    # max(D, 128).  Keep the double-buffered reps stream within ~32 MiB so it
    # fits comfortably on v7x (64 MiB physical / 32 MiB default-scoped VMEM)
    # as well as v5e/v6e; tile_n stays a multiple of 256 (MXU depth).
    lane_d = _round_up(D, 128)
    reps_budget = 32 << 20
    max_tile = max(256, (reps_budget // (2 * 4 * lane_d)) // 256 * 256)
    per_split = -(-N // num_splits)                    # ceil(N / num_splits)
    tile_n = max(256, min(tile_n, max_tile, _round_up(per_split, 256)))
    tiles_per_split = max(1, -(-per_split // tile_n))
    n_pad = num_splits * tiles_per_split * tile_n
    if n_pad != N:
        # Padded rows fall outside every bag's [start, end) and are zero anyway.
        reps = jnp.pad(reps, ((0, n_pad - N), (0, 0)))

    cost = pl.CostEstimate(
        flops=2 * n_pad * D * B,
        transcendentals=0,
        bytes_accessed=n_pad * D * 4 + num_splits * B * D * 4 + 2 * B * 4,
    )

    # Streaming kernel: HBM-bound scan over reps producing per-split bag sums.
    partials = pl.pallas_call(
        _bag_sum_kernel,
        out_shape=jax.ShapeDtypeStruct((num_splits, B, D), jnp.float32),
        grid_spec=pltpu.PrefetchScalarGridSpec(
            num_scalar_prefetch=0,
            grid=(num_splits, tiles_per_split),
            in_specs=[
                pl.BlockSpec((tile_n, D), lambda c, t: (c * tiles_per_split + t, 0)),
                pl.BlockSpec((B, 1), lambda c, t: (0, 0)),     # bag starts
                pl.BlockSpec((B, 1), lambda c, t: (0, 0)),     # bag ends
            ],
            out_specs=pl.BlockSpec((1, B, D), lambda c, t: (c, 0, 0)),
        ),
        compiler_params=pltpu.CompilerParams(
            dimension_semantics=("parallel", "arbitrary"),     # split axis / N reduction
            vmem_limit_bytes=48 << 20,
        ),
        cost_estimate=cost,
    )(reps, starts, ends)

    # One-shot finalize: combine splits, scale by 1/count, dense + bias, softmax.
    return pl.pallas_call(
        _finalize_kernel,
        out_shape=jax.ShapeDtypeStruct((B, C), jnp.float32),
        grid=(1,),
        in_specs=[
            pl.BlockSpec((num_splits, B, D), lambda i: (0, 0, 0)),
            pl.BlockSpec((B, 1), lambda i: (0, 0)),
            pl.BlockSpec((C, D), lambda i: (0, 0)),
            pl.BlockSpec((1, C), lambda i: (0, 0)),
        ],
        out_specs=pl.BlockSpec((B, C), lambda i: (0, 0)),
    )(partials, inv_cnt, w, b2)


if __name__ == "__main__":
    # config: encoder='cnn' -> piece=1, filter_num=32, class_num=8
    class_num = 8
    filter_num = 32
    piece = 1
    D = filter_num * piece

    # 4 bags over 12 sentences: scope has batch_size+1 entries
    scope = jnp.array([0, 3, 5, 8, 12], dtype=jnp.int32)
    N = 12
    B = scope.shape[0] - 1

    key = jax.random.PRNGKey(0)
    k1, k2, k3 = jax.random.split(key, 3)
    reps = jax.random.normal(k1, (N, D), dtype=jnp.float32)
    bound = 1.0 / np.sqrt(D)  # deterministic init mimicking nn.Linear default
    weight = jax.random.uniform(k2, (class_num, D), minval=-bound, maxval=bound, dtype=jnp.float32)
    bias = jax.random.uniform(k3, (class_num,), minval=-bound, maxval=bound, dtype=jnp.float32)
    label = jnp.zeros((B,), dtype=jnp.int32)  # unused in forward (parity with module signature)

    probs = jax.block_until_ready(avg_forward(reps, scope, weight, bias, class_num))

    # pure-numpy reference check
    reps_np, w_np, b_np, sc = map(np.asarray, (reps, weight, bias, scope))
    bag = np.stack([reps_np[sc[i]:sc[i + 1]].reshape(-1, D).mean(axis=0) for i in range(B)])
    logits = bag @ w_np.T + b_np
    ref = np.exp(logits - logits.max(-1, keepdims=True))
    ref = ref / ref.sum(-1, keepdims=True)
    assert probs.shape == (B, class_num)
    assert np.allclose(np.asarray(probs), ref, atol=1e-5), "mismatch vs reference"

    print("KERNEL_OK")
</pallas_src>

<mosaic_0001>
module attributes {stable_mosaic.version = 11 : i64} {
  func.func @_bag_sum_kernel(%arg0: i32, %arg1: i32, %arg2: memref<256x32xf32, #tpu.memory_space<vmem>>, %arg3: memref<4x1xi32, #tpu.memory_space<vmem>>, %arg4: memref<4x1xi32, #tpu.memory_space<vmem>>, %arg5: memref<1x4x32xf32, #tpu.memory_space<vmem>>) attributes {dimension_semantics = [#tpu.dimension_semantics<parallel>, #tpu.dimension_semantics<arbitrary>], iteration_bounds = array<i64: 2, 1>, scalar_prefetch = 0 : i64, scratch_operands = 0 : i64, tpu.core_type = #tpu.core_type<tc>, window_params = [{transform_indices = @transform_0, window_bounds = array<i64: 256, 32>}, {pipeline_mode = #tpu.pipeline_mode<synchronous>, transform_indices = @transform_1, window_bounds = array<i64: 4, 1>}, {pipeline_mode = #tpu.pipeline_mode<synchronous>, transform_indices = @transform_2, window_bounds = array<i64: 4, 1>}, {transform_indices = @transform_3, window_bounds = array<i64: 1, 4, 32>}]} {
    %c0_i32 = arith.constant 0 : i32
    %0 = arith.cmpi eq, %arg1, %c0_i32 : i32
    %1 = arith.extui %0 : i1 to i32
    %c0_i32_0 = arith.constant 0 : i32
    %2 = arith.cmpi ne, %1, %c0_i32_0 : i32
    scf.if %2 {
      %cst_12 = arith.constant 0.000000e+00 : f32
      %24 = vector.broadcast %cst_12 : f32 to vector<1x4x32xf32>
      %c0_13 = arith.constant 0 : index
      %c0_14 = arith.constant 0 : index
      %c0_15 = arith.constant 0 : index
      %25 = vector.load %arg5[%c0_13, %c0_14, %c0_15] : memref<1x4x32xf32, #tpu.memory_space<vmem>>, vector<1x4x32xf32>
      tpu.vector_store %arg5[%c0_13, %c0_14, %c0_15], %24 {strides = array<i32>} : memref<1x4x32xf32, #tpu.memory_space<vmem>>, vector<1x4x32xf32>,
    } else {
    }
    %c1_i32 = arith.constant 1 : i32
    %3 = arith.muli %arg0, %c1_i32 : i32
    %4 = arith.addi %3, %arg1 : i32
    %c256_i32 = arith.constant 256 : i32
    %5 = arith.muli %4, %c256_i32 : i32
    %6 = tpu.iota {dimensions = array<i32: 1>} : vector<4x256xi32>
    %7 = vector.broadcast %5 : i32 to vector<4x256xi32>
    %8 = arith.addi %7, %6 : vector<4x256xi32>
    %c0 = arith.constant 0 : index
    %c0_1 = arith.constant 0 : index
    %9 = vector.load %arg3[%c0, %c0_1] : memref<4x1xi32, #tpu.memory_space<vmem>>, vector<4x1xi32>
    %10 = vector.broadcast %9 : vector<4x1xi32> to vector<4x256xi32>
    %11 = arith.cmpi sge, %8, %10 : vector<4x256xi32>
    %c0_2 = arith.constant 0 : index
    %c0_3 = arith.constant 0 : index
    %12 = vector.load %arg4[%c0_2, %c0_3] : memref<4x1xi32, #tpu.memory_space<vmem>>, vector<4x1xi32>
    %13 = vector.broadcast %12 : vector<4x1xi32> to vector<4x256xi32>
    %14 = arith.cmpi slt, %8, %13 : vector<4x256xi32>
    %15 = arith.andi %11, %14 : vector<4x256xi1>
    %16 = arith.extui %15 : vector<4x256xi1> to vector<4x256xi32>
    %17 = arith.sitofp %16 : vector<4x256xi32> to vector<4x256xf32>
    %c0_4 = arith.constant 0 : index
    %c0_5 = arith.constant 0 : index
    %c0_6 = arith.constant 0 : index
    %18 = vector.load %arg5[%c0_4, %c0_5, %c0_6] : memref<1x4x32xf32, #tpu.memory_space<vmem>>, vector<1x4x32xf32>
    %c0_7 = arith.constant 0 : index
    %c0_8 = arith.constant 0 : index
    %19 = vector.load %arg2[%c0_7, %c0_8] : memref<256x32xf32, #tpu.memory_space<vmem>>, vector<256x32xf32>
    %cst = arith.constant dense<0.000000e+00> : vector<4x32xf32>
    %20 = tpu.matmul %17, %19, %cst {dimension_numbers = #tpu.dot_dimension_numbers<[1], [0], [0], [1], [0, 0, 1, 1], [], []>} : vector<4x256xf32>, vector<256x32xf32>, vector<4x32xf32> -> vector<4x32xf32>
    %21 = vector.shape_cast %20 : vector<4x32xf32> to vector<1x4x32xf32>
    %22 = arith.addf %18, %21 : vector<1x4x32xf32>
    %c0_9 = arith.constant 0 : index
    %c0_10 = arith.constant 0 : index
    %c0_11 = arith.constant 0 : index
    %23 = vector.load %arg5[%c0_9, %c0_10, %c0_11] : memref<1x4x32xf32, #tpu.memory_space<vmem>>, vector<1x4x32xf32>
    tpu.vector_store %arg5[%c0_9, %c0_10, %c0_11], %22 {strides = array<i32>} : memref<1x4x32xf32, #tpu.memory_space<vmem>>, vector<1x4x32xf32>,
    return
  }
  func.func @transform_0(%arg0: i32, %arg1: i32) -> (i32, i32) {
    %c1_i32 = arith.constant 1 : i32
    %0 = arith.muli %arg0, %c1_i32 : i32
    %1 = arith.addi %0, %arg1 : i32
    %c0_i32 = arith.constant 0 : i32
    %c0_i32_0 = arith.constant 0 : i32
    return %1, %c0_i32 : i32, i32
  }
  func.func @transform_1(%arg0: i32, %arg1: i32) -> (i32, i32) {
    %c0_i32 = arith.constant 0 : i32
    %c0_i32_0 = arith.constant 0 : i32
    %c0_i32_1 = arith.constant 0 : i32
    return %c0_i32, %c0_i32_0 : i32, i32
  }
  func.func @transform_2(%arg0: i32, %arg1: i32) -> (i32, i32) {
    %c0_i32 = arith.constant 0 : i32
    %c0_i32_0 = arith.constant 0 : i32
    %c0_i32_1 = arith.constant 0 : i32
    return %c0_i32, %c0_i32_0 : i32, i32
  }
  func.func @transform_3(%arg0: i32, %arg1: i32) -> (i32, i32, i32) {
    %c0_i32 = arith.constant 0 : i32
    %c0_i32_0 = arith.constant 0 : i32
    %c0_i32_1 = arith.constant 0 : i32
    return %arg0, %c0_i32, %c0_i32_0 : i32, i32, i32
  }
}

</mosaic_0001>

<llo_original>
// kernel: tpu_custom_call.1
$region0: #{tpu_custom_call.1}
  #allocation0 [shape = 'u32[]', space=smem, size = 0x4, offset = 0x4, fixed_abs, tag = 'smem constant byte address 0x4 - core index']
  #allocation1 [shape = 'u32[72,128]{1,0:T(1,128)}', space=vmem, size = 0x9000, scoped, tag = 'internal scratch']
  %s0 = inlined_call_operand.vmem [shape: f32[512,32], index: 0, kind: input, shape index: {}]
  %s1 = inlined_call_operand.vmem [shape: s32[4,1], index: 1, kind: input, shape index: {}]
  %s2 = inlined_call_operand.vmem [shape: s32[4,1], index: 2, kind: input, shape index: {}]
  %s3 = inlined_call_operand.hbm [shape: f32[2,4,32], index: 3, kind: output, shape index: {}]
  %s4 = sld [smem:[#allocation0]]
  $region49: #{tpu_custom_call.1} parent=0
    _
  %s6 = ssub.s32 1, %s4
  %s7 = scalar_select 0, %s6, %s4
  $region1: #{tpu_custom_call.1} parent=0
    #allocation2 [shape = 'u8[4096]{0}', space=vmem, size = 0x1000, scoped, tag = 'output window, operand 0']
    #allocation3 [shape = 's32[2]{0}', space=sflag, size = 0x8, scoped, tag = 'scoped memory for tpu_custom_call.1']
    %8 = vsyncpa [#allocation3], 0
    %s9 = scalar_lea.sflag [#allocation3], 1
    %10 = vsyncpa %s9, 0
    loop: start=0, step=1, limit=4
    $region2: #{tpu_custom_call.1} parent=1 // loop_pre_header
      _
    $region3: #{tpu_custom_call.1} parent=1 // loop_header
      %s12 = sphi 0, %s16
      %p13 = scmp.ge.s32.totalorder %s12, 4
      %s19 = sphi 0, %s31
      %s20 = sphi 0, %s27
      %s21 = sphi 0, %s19
      %s22 = sphi 0, %s20
      %s23 = sphi 0, %s21
      %s24 = sphi 0, %s22
      %s36 = sphi 0, %s38
      %s39 = sphi 0, %s36
      %s40 = sphi 0, %s39
      %s56 = sphi 0, %s40
      %s60 = sphi 0, %s60
      %s62 = sphi 0, %s60
      %s63 = sphi 0, %s62
      %s77 = sphi 0, %s63
      %s81 = sphi 0, %s81
      %s83 = sphi 0, %s81
      %s84 = sphi 0, %s83
      %s98 = sphi 0, %s84
      %s104 = sphi 0, %s106
      %s107 = sphi 0, %s104
      %s108 = sphi 0, %s107
      %s124 = sphi 0, %s108
    $region4: #{tpu_custom_call.1} parent=1 // loop_header_branch
      %15 = sbr.rel (%p13) target = $region8
    $region5: #{tpu_custom_call.1} parent=1 // loop_body
      %s17 = ssub.s32 %s12, 1
      %s18 = ssub.s32 %s12, 2
      %s25 = sadd.s32 1, %s20
      %p26 = scmp.ge.s32.totalorder %s25, 1
      %s27 = scalar_select %p26, 0, %s25
      %s28 = sadd.s32 1, %s19
      %s29 = scalar_select %p26, %s28, %s19
      %p30 = scmp.ge.s32.totalorder %s29, 2
      %s31 = scalar_select %p30, 0, %s29
      %s32 = sadd.s32 %s19, %s20
      %s33 = sadd.s32 %s31, %s27
      %s34 = ssub.s32 %s32, %s33
      %p35 = scmp.eq.s32.totalorder %s34, 0
      %s37 = sadd.s32 %s36, 1
      %s38 = scalar_select %p35, %s36, %s37
      %p41 = pneg %p35
      %p42 = scmp.eq.s32.totalorder %s12, 1
      %p43 = por %p41, %p42
      %p44 = scmp.ne.s32.totalorder %s36, %s39
      %p45 = scmp.eq.s32.totalorder %s12, 0
      %p46 = por %p44, %p45
      %p47 = scmp.ne.s32.totalorder %s36, %s39
      %p48 = scmp.eq.s32.totalorder %s17, 1
      %p49 = por %p47, %p48
      %p50 = scmp.ne.s32.totalorder %s39, %s40
      %p51 = scmp.eq.s32.totalorder %s17, 0
      %p52 = por %p50, %p51
      %p53 = scmp.ne.s32.totalorder %s39, %s40
      %p54 = scmp.eq.s32.totalorder %s18, 1
      %p55 = por %p53, %p54
      %p57 = scmp.ne.s32.totalorder %s40, %s56
      %p58 = scmp.eq.s32.totalorder %s18, 0
      %p59 = por %p57, %p58
      %s61 = sadd.s32 %s60, 1
      %p64 = scmp.eq.s32.totalorder %s12, 1
      %p65 = scmp.ne.s32.totalorder %s60, %s62
      %p66 = scmp.eq.s32.totalorder %s12, 0
      %p67 = por %p65, %p66
      %p68 = scmp.ne.s32.totalorder %s60, %s62
      %p69 = scmp.eq.s32.totalorder %s17, 1
      %p70 = por %p68, %p69
      %p71 = scmp.ne.s32.totalorder %s62, %s63
      %p72 = scmp.eq.s32.totalorder %s17, 0
      %p73 = por %p71, %p72
      %p74 = scmp.ne.s32.totalorder %s62, %s63
      %p75 = scmp.eq.s32.totalorder %s18, 1
      %p76 = por %p74, %p75
      %p78 = scmp.ne.s32.totalorder %s63, %s77
      %p79 = scmp.eq.s32.totalorder %s18, 0
      %p80 = por %p78, %p79
      %s82 = sadd.s32 %s81, 1
      %p85 = scmp.eq.s32.totalorder %s12, 1
      %p86 = scmp.ne.s32.totalorder %s81, %s83
      %p87 = scmp.eq.s32.totalorder %s12, 0
      %p88 = por %p86, %p87
      %p89 = scmp.ne.s32.totalorder %s81, %s83
      %p90 = scmp.eq.s32.totalorder %s17, 1
      %p91 = por %p89, %p90
      %p92 = scmp.ne.s32.totalorder %s83, %s84
      %p93 = scmp.eq.s32.totalorder %s17, 0
      %p94 = por %p92, %p93
      %p95 = scmp.ne.s32.totalorder %s83, %s84
      %p96 = scmp.eq.s32.totalorder %s18, 1
      %p97 = por %p95, %p96
      %p99 = scmp.ne.s32.totalorder %s84, %s98
      %p100 = scmp.eq.s32.totalorder %s18, 0
      %p101 = por %p99, %p100
      %s102 = ssub.s32 %s19, %s31
      %p103 = scmp.eq.s32.totalorder %s102, 0
      %s105 = sadd.s32 %s104, 1
      %s106 = scalar_select %p103, %s104, %s105
      %p109 = pneg %p103
      %p110 = scmp.eq.s32.totalorder %s12, 1
      %p111 = por %p109, %p110
      %p112 = scmp.ne.s32.totalorder %s104, %s107
      %p113 = scmp.eq.s32.totalorder %s12, 0
      %p114 = por %p112, %p113
      %p115 = scmp.ne.s32.totalorder %s104, %s107
      %p116 = scmp.eq.s32.totalorder %s17, 1
      %p117 = por %p115, %p116
      %p118 = scmp.ne.s32.totalorder %s107, %s108
      %p119 = scmp.eq.s32.totalorder %s17, 0
      %p120 = por %p118, %p119
      %p121 = scmp.ne.s32.totalorder %s107, %s108
      %p122 = scmp.eq.s32.totalorder %s18, 1
      %p123 = por %p121, %p122
      %p125 = scmp.ne.s32.totalorder %s108, %s124
      %p126 = scmp.eq.s32.totalorder %s18, 0
      %p127 = por %p125, %p126
      %p128 = scmp.le.s32.totalorder 1, %s12
      %p129 = scmp.lt.s32.totalorder %s12, 3
      %p130 = pnand %p128, %p129
      %p131 = pneg %p130
      // Predicated region
      $region9: #{tpu_custom_call.1} parent=5 // pred_check
        _
      $region10: #{tpu_custom_call.1} parent=5 // pred_check_branch
        %133 = sbr.rel (%p130) target = $region12
      $region11: #{tpu_custom_call.1} parent=5 // pred_region
        %s134 = ssub.s32 %s12, 1
        // Predicated region
        $region13: #{tpu_custom_call.1} parent=11 // pred_check
          %p135 = pneg %p73
        $region14: #{tpu_custom_call.1} parent=11 // pred_check_branch
          %137 = sbr.rel (%p135) target = $region16
        $region15: #{tpu_custom_call.1} parent=11 // pred_region
          _
        $region16: #{tpu_custom_call.1} parent=11 // pred_fallthru
          _
        // Predicated region
        $region17: #{tpu_custom_call.1} parent=11 // pred_check
          %p138 = pneg %p94
        $region18: #{tpu_custom_call.1} parent=11 // pred_check_branch
          %140 = sbr.rel (%p138) target = $region20
        $region19: #{tpu_custom_call.1} parent=11 // pred_region
          _
        $region20: #{tpu_custom_call.1} parent=11 // pred_fallthru
          _
      $region12: #{tpu_custom_call.1} parent=5 // pred_fallthru
        _
      %p141 = scmp.lt.s32.totalorder %s12, 2
      // Predicated region
      $region21: #{tpu_custom_call.1} parent=5 // pred_check
        %p142 = pneg %p141
      $region22: #{tpu_custom_call.1} parent=5 // pred_check_branch
        %144 = sbr.rel (%p142) target = $region24
      $region23: #{tpu_custom_call.1} parent=5 // pred_region
        // Predicated region
        $region25: #{tpu_custom_call.1} parent=23 // pred_check
          %p145 = pneg %p46
        $region26: #{tpu_custom_call.1} parent=23 // pred_check_branch
          %147 = sbr.rel (%p145) target = $region28
        $region27: #{tpu_custom_call.1} parent=23 // pred_region
          %s148 = sadd.s32 %s19, %s20
          %s149 = smul.u32 32, %s148
          %p150 = scmp.lt.s32.totalorder %s149, 63
          %s151 = scalar_select %p150, %s149, 63
          %s152 = smul.addr %s151, 8
          %s153 = scalar_lea.vmem %s0, %s152
          %s154 = sadd.s32 %s19, %s20
          %s155 = smul.u32 32, %s154
        $region28: #{tpu_custom_call.1} parent=23 // pred_fallthru
          _
      $region24: #{tpu_custom_call.1} parent=5 // pred_fallthru
        _
      %p156 = scmp.le.s32.totalorder 1, %s12
      %p157 = scmp.lt.s32.totalorder %s12, 3
      %p158 = pnand %p156, %p157
      %p159 = pneg %p158
      // Predicated region
      $region29: #{tpu_custom_call.1} parent=5 // pred_check
        _
      $region30: #{tpu_custom_call.1} parent=5 // pred_check_branch
        %161 = sbr.rel (%p158) target = $region32
      $region31: #{tpu_custom_call.1} parent=5 // pred_region
        %s162 = ssub.s32 %s12, 1
        %s163 = sadd.s32 %s21, %s22
        %s164 = smul.u32 32, %s163
        %p165 = scmp.lt.s32.totalorder %s164, 63
        %s166 = scalar_select %p165, %s164, 63
        %s167 = smul.addr %s166, 8
        %s168 = scalar_lea.vmem %s0, %s167
        %p169 = pneg %p52
        %p170 = pneg %p49
        %p171 = pneg %p73
        %p172 = pneg %p70
        %p173 = pneg %p94
        %p174 = pneg %p91
        %p175 = pneg %p120
        %p176 = pneg %p117
        %s177 = sand.u32 %s107, 1
        %s178 = scalar_lea.sflag [#allocation3], %s177
        %s179 = sand.u32 %s107, 1
        %s180 = smul.addr %s179, 4
        %s181 = scalar_lea.vmem [#allocation2], %s180
        %s182 = sadd.s32 %s21, %s22
        %s183 = smul.u32 32, %s182
        %p184 = scmp.lt.s32.totalorder %s183, 63
        %s185 = scalar_select %p184, %s183, 63
        %s186 = smul.addr %s185, 8
        %s187 = scalar_lea.vmem %s0, %s186
        %s188 = sadd.s32 %s21, %s22
        %s189 = smul.u32 32, %s188
        %p190 = scmp.eq.s32.totalorder %s22, 0
        // Predicated region
        $region33: #{tpu_custom_call.1} parent=31 // pred_check
          %p191 = pneg %p190
        $region34: #{tpu_custom_call.1} parent=31 // pred_check_branch
          %193 = sbr.rel (%p191) target = $region36
        $region35: #{tpu_custom_call.1} parent=31 // pred_region
          %vm194 = vcmask 257024
          %195 = vst.msk [vmem:[%s181] sm:$0xf] %vm194, 0.0
        $region36: #{tpu_custom_call.1} parent=31 // pred_fallthru
          _
        %s196 = sadd.s32 %s21, %s22
        %s197 = smul.u32 %s196, 256
        %v198 = vlaneseq
        %v199 = vand.u32 %v198, 127
        %v200 = vadd.s32 %v199, 128
        %v201 = vstv %s197
        %v202 = vadd.s32 %v201, %v199
        %v203 = vadd.s32 %v201, %v200
        %v204 = vld [vmem:[%s1] sm:$0xf]
        %205 = vset.pattern.permute.xlu0 0
        %206 = vperm.xlu0 %205, %v204
        %v207 = vpop.permute.xlu0 %206
        %vm208 = vcmp.ge.s32.totalorder %v202, %v207
        %vm209 = vcmp.ge.s32.totalorder %v203, %v207
        %v210 = vld [vmem:[%s2] sm:$0xf]
        %211 = vset.pattern.permute.xlu0 0
        %212 = vperm.xlu0 %211, %v210
        %v213 = vpop.permute.xlu0 %212
        %vm214 = vcmp.lt.s32.totalorder %v202, %v213
        %vm215 = vcmp.lt.s32.totalorder %v203, %v213
        %vm216 = vmand %vm208, %vm214
        %vm217 = vmand %vm209, %vm215
        %v218 = vsel %vm216, 1, 0
        %v219 = vsel %vm217, 1, 0
        %v220 = vcvt.s32.f32 %v218
        %v221 = vcvt.s32.f32 %v219
        %v222 = vld [vmem:[%s181] sm:$0xf]
        %v223 = vld [vmem:[%s187] sm:$0xff]
        %v224 = vld [vmem:[%s187 + $0x8] sm:$0xff]
        %v225 = vld [vmem:[%s187 + $0x10] sm:$0xff]
        %v226 = vld [vmem:[%s187 + $0x18] sm:$0xff]
        %v227 = vld [vmem:[%s187 + $0x20] sm:$0xff]
        %v228 = vld [vmem:[%s187 + $0x28] sm:$0xff]
        %v229 = vld [vmem:[%s187 + $0x30] sm:$0xff]
        %v230 = vld [vmem:[%s187 + $0x38] sm:$0xff]
        %v231 = vld [vmem:[%s187 + $0x40] sm:$0xff]
        %v232 = vld [vmem:[%s187 + $0x48] sm:$0xff]
        %v233 = vld [vmem:[%s187 + $0x50] sm:$0xff]
        %v234 = vld [vmem:[%s187 + $0x58] sm:$0xff]
        %v235 = vld [vmem:[%s187 + $0x60] sm:$0xff]
        %v236 = vld [vmem:[%s187 + $0x68] sm:$0xff]
        %v237 = vld [vmem:[%s187 + $0x70] sm:$0xff]
        %v238 = vld [vmem:[%s187 + $0x78] sm:$0xff]
        %v239 = vld [vmem:[%s187 + $0x80] sm:$0xff]
        %v240 = vld [vmem:[%s187 + $0x88] sm:$0xff]
        %v241 = vld [vmem:[%s187 + $0x90] sm:$0xff]
        %v242 = vld [vmem:[%s187 + $0x98] sm:$0xff]
        %v243 = vld [vmem:[%s187 + $0xa0] sm:$0xff]
        %v244 = vld [vmem:[%s187 + $0xa8] sm:$0xff]
        %v245 = vld [vmem:[%s187 + $0xb0] sm:$0xff]
        %v246 = vld [vmem:[%s187 + $0xb8] sm:$0xff]
        %v247 = vld [vmem:[%s187 + $0xc0] sm:$0xff]
        %v248 = vld [vmem:[%s187 + $0xc8] sm:$0xff]
        %v249 = vld [vmem:[%s187 + $0xd0] sm:$0xff]
        %v250 = vld [vmem:[%s187 + $0xd8] sm:$0xff]
        %v251 = vld [vmem:[%s187 + $0xe0] sm:$0xff]
        %v252 = vld [vmem:[%s187 + $0xe8] sm:$0xff]
        %v253 = vld [vmem:[%s187 + $0xf0] sm:$0xff]
        %v254 = vld [vmem:[%s187 + $0xf8] sm:$0xff]
        %255 = vmatpush.msra.mxu0 %v238
        %256 = vmatpush.msra.mxu0 %v237
        %257 = vmatpush.msra.mxu0 %v236
        %258 = vmatpush.msra.mxu0 %v235
        %259 = vmatpush.msra.mxu0 %v234
        %260 = vmatpush.msra.mxu0 %v233
        %261 = vmatpush.msra.mxu0 %v232
        %262 = vmatpush.msra.mxu0 %v231
        %263 = vmatpush.msra.mxu0 %v230
        %264 = vmatpush.msra.mxu0 %v229
        %265 = vmatpush.msra.mxu0 %v228
        %266 = vmatpush.msra.mxu0 %v227
        %267 = vmatpush.msra.mxu0 %v226
        %268 = vmatpush.msra.mxu0 %v225
        %269 = vmatpush.msra.mxu0 %v224
        %270 = vmatpush.msra.mxu0 %v223
        %271 = vmatmul.f32.gmra.mxu0 %v220
        %v272 = vpop.f32.mrf.mxu0
        %v273 = vadd.f32 0.0, %v272
        %274 = vdwg.mxu0
        %275 = vmatpush.msra.mxu0 %v254
        %276 = vmatpush.msra.mxu0 %v253
        %277 = vmatpush.msra.mxu0 %v252
        %278 = vmatpush.msra.mxu0 %v251
        %279 = vmatpush.msra.mxu0 %v250
        %280 = vmatpush.msra.mxu0 %v249
        %281 = vmatpush.msra.mxu0 %v248
        %282 = vmatpush.msra.mxu0 %v247
        %283 = vmatpush.msra.mxu0 %v246
        %284 = vmatpush.msra.mxu0 %v245
        %285 = vmatpush.msra.mxu0 %v244
        %286 = vmatpush.msra.mxu0 %v243
        %287 = vmatpush.msra.mxu0 %v242
        %288 = vmatpush.msra.mxu0 %v241
        %289 = vmatpush.msra.mxu0 %v240
        %290 = vmatpush.msra.mxu0 %v239
        %291 = vmatmul.f32.gmra.mxu0 %v221
        %v292 = vpop.f32.mrf.mxu0
        %v293 = vadd.f32 %v273, %v292
        %294 = vdwg.mxu0
        %v295 = vadd.f32 %v222, %v293
        %vm296 = vcmask 257024
        %297 = vst.msk [vmem:[%s181] sm:$0xf] %vm296, %v295
        %s298 = sand.u32 %s107, 1
        %s299 = scalar_lea.sflag [#allocation3], %s298
        %s300 = sand.u32 %s107, 1
        %s301 = smul.addr %s300, 4
        %s302 = scalar_lea.vmem [#allocation2], %s301
        // Predicated region
        $region37: #{tpu_custom_call.1} parent=31 // pred_check
          %p303 = pneg %p117
        $region38: #{tpu_custom_call.1} parent=31 // pred_check_branch
          %305 = sbr.rel (%p303) target = $region40
        $region39: #{tpu_custom_call.1} parent=31 // pred_region
          %307 = vsyncadd %s299, 0
          %s308 = smul.addr %s21, 4
          %s309 = scalar_lea.hbm %s3, %s308
          %s311 = sshll.u32 %s302, 4
          %s312 = int_to_ptr.vmem [resolvable:$true] %s311
          %s313 = sshll.u32 %s309, 4
          %s314 = int_to_ptr.hbm [resolvable:$true] %s313
          %316 = dma.vmem_to_hbm [thread:$0]  %s312, 64, %s314, %s299
        $region40: #{tpu_custom_call.1} parent=31 // pred_fallthru
          _
      $region32: #{tpu_custom_call.1} parent=5 // pred_fallthru
        _
      %p317 = scmp.le.s32.totalorder 2, %s12
      // Predicated region
      $region41: #{tpu_custom_call.1} parent=5 // pred_check
        %p318 = pneg %p317
      $region42: #{tpu_custom_call.1} parent=5 // pred_check_branch
        %320 = sbr.rel (%p318) target = $region44
      $region43: #{tpu_custom_call.1} parent=5 // pred_region
        %s321 = ssub.s32 %s12, 2
        // Predicated region
        $region45: #{tpu_custom_call.1} parent=43 // pred_check
          %p322 = pneg %p123
        $region46: #{tpu_custom_call.1} parent=43 // pred_check_branch
          %324 = sbr.rel (%p322) target = $region48
        $region47: #{tpu_custom_call.1} parent=43 // pred_region
          %s325 = sand.u32 %s108, 1
          %s326 = scalar_lea.sflag [#allocation3], %s325
          %s327 = sand.u32 %s108, 1
          %s328 = smul.addr %s327, 4
          %s329 = scalar_lea.vmem [#allocation2], %s328
          %331 = dma.done %s326, 64
        $region48: #{tpu_custom_call.1} parent=43 // pred_fallthru
          _
      $region44: #{tpu_custom_call.1} parent=5 // pred_fallthru
        _
    $region6: #{tpu_custom_call.1} parent=1 // loop_footer
      %s16 = sadd.s32 1, %s12
    $region7: #{tpu_custom_call.1} parent=1 // loop_footer_branch
      %11 = sbr.rel target = $region3
    $region8: #{tpu_custom_call.1} parent=1 // loop_exit
      _
    %332 = vsyncpa [#allocation3], 1
    %s333 = scalar_lea.sflag [#allocation3], 1
    %334 = vsyncpa %s333, 1

</llo_original>
